<compile_context>
chip_gen: v5e
topology: v5e:2x2
jax: 0.10.0
libtpu: 0.0.40
codegen_flags: <defaults>
</compile_context>

<pallas_src>
import functools

import jax
import jax.numpy as jnp
from jax.experimental import pallas as pl
from jax.experimental.pallas import tpu as pltpu

_LANE = 128
_SUBLANE = 8
_NEG_BIG = -1e30  # baked into padded class-bias columns -> exp underflows to 0


def _round_up(n, m):
    return ((n + m - 1) // m) * m


def mlp_logsoftmax_kernel(x_ref, w1_ref, b1_ref, w2_ref, b2_ref, w3_ref, b3_ref,
                          o_ref):
    # Weights are (in, out), zero-padded to 128-lane multiples.  Padded hidden
    # columns stay zero through matmul + ReLU and feed zero-padded rows of the
    # next weight, so they are inert.  Padded class columns carry a -1e30 bias
    # (set in prepare_params), so they vanish from max / sum-exp without any
    # in-kernel masking work.
    h1 = jnp.dot(x_ref[...], w1_ref[...], preferred_element_type=jnp.float32)
    h1 = jnp.maximum(h1 + b1_ref[...], 0.0)
    h2 = jnp.dot(h1, w2_ref[...], preferred_element_type=jnp.float32)
    h2 = jnp.maximum(h2 + b2_ref[...], 0.0)
    logits = jnp.dot(h2, w3_ref[...], preferred_element_type=jnp.float32)
    logits = logits + b3_ref[...]

    # Numerically stable log_softmax along dim=1.
    m = jnp.max(logits, axis=-1, keepdims=True)
    shifted = logits - m
    lse = jnp.log(jnp.sum(jnp.exp(shifted), axis=-1, keepdims=True))
    o_ref[...] = (shifted - lse).astype(o_ref.dtype)


def prepare_params(params, *, n_classes=10):
    """One-time glue (hoisted out of the per-call path).

    Transposes PyTorch (out, in) weights to (in, out), reshapes biases to
    (1, out), zero-pads hidden / output dims to 128-lane multiples, and bakes
    a -1e30 bias into padded class columns so the kernel needs no mask.
    """
    w1, w2, w3 = params["w1"], params["w2"], params["w3"]
    b1, b2, b3 = params["b1"], params["b2"], params["b3"]
    in_f = w1.shape[1]
    h1p = _round_up(w1.shape[0], _LANE)
    h2p = _round_up(w2.shape[0], _LANE)
    outp = _round_up(w3.shape[0], _LANE)

    def pad2(a, rows, cols, fill=0.0):
        return jnp.pad(a, ((0, rows - a.shape[0]), (0, cols - a.shape[1])),
                       constant_values=fill)

    return {
        "w1": pad2(w1.T.astype(jnp.float32), in_f, h1p),
        "b1": pad2(b1.reshape(1, -1).astype(jnp.float32), 1, h1p),
        "w2": pad2(w2.T.astype(jnp.float32), h1p, h2p),
        "b2": pad2(b2.reshape(1, -1).astype(jnp.float32), 1, h2p),
        "w3": pad2(w3.T.astype(jnp.float32), h2p, outp),
        # Padded class columns get a huge negative bias -> masked "for free".
        "b3": pad2(b3.reshape(1, -1).astype(jnp.float32), 1, outp, fill=_NEG_BIG),
    }


def _pick_batch_tile(B, tm_max):
    """8-aligned batch tile that keeps pad waste small and tiles <= tm_max."""
    B = max(B, 1)
    n_tiles = pl.cdiv(B, tm_max)
    tm = _round_up(pl.cdiv(B, n_tiles), _SUBLANE)
    return min(tm, _round_up(tm_max, _SUBLANE))


@functools.partial(jax.jit, static_argnames=("n_classes", "tm_max"))
def linear_module_forward(x, prep, *, n_classes=10, tm_max=512):
    """Forward pass of LinearModule: x.view(-1, input_size) -> log_softmax."""
    in_f = prep["w1"].shape[0]
    h1p = prep["w1"].shape[1]
    h2p = prep["w2"].shape[1]
    outp = prep["w3"].shape[1]

    x2d = x.reshape(-1, in_f).astype(jnp.float32)
    B = x2d.shape[0]

    tm = _pick_batch_tile(B, tm_max)
    b_pad = _round_up(B, tm)
    if b_pad != B:
        x2d = jnp.pad(x2d, ((0, b_pad - B), (0, 0)))

    grid = (b_pad // tm,)

    flops = 2 * b_pad * (in_f * h1p + h1p * h2p + h2p * outp)
    bytes_accessed = 4 * (b_pad * (in_f + outp)
                          + in_f * h1p + h1p * h2p + h2p * outp
                          + h1p + h2p + outp)
    cost = pl.CostEstimate(flops=flops,
                           transcendentals=b_pad * (outp + 1),
                           bytes_accessed=bytes_accessed)

    out = pl.pallas_call(
        mlp_logsoftmax_kernel,
        out_shape=jax.ShapeDtypeStruct((b_pad, outp), jnp.float32),
        grid=grid,
        in_specs=[
            pl.BlockSpec((tm, in_f), lambda i: (i, 0)),    # x tile (pipelined)
            pl.BlockSpec((in_f, h1p), lambda i: (0, 0)),   # W1 (resident)
            pl.BlockSpec((1, h1p), lambda i: (0, 0)),      # b1
            pl.BlockSpec((h1p, h2p), lambda i: (0, 0)),    # W2
            pl.BlockSpec((1, h2p), lambda i: (0, 0)),      # b2
            pl.BlockSpec((h2p, outp), lambda i: (0, 0)),   # W3
            pl.BlockSpec((1, outp), lambda i: (0, 0)),     # b3 (mask baked in)
        ],
        out_specs=pl.BlockSpec((tm, outp), lambda i: (i, 0)),
        compiler_params=pltpu.CompilerParams(
            dimension_semantics=("parallel",),
            vmem_limit_bytes=32 * 1024 * 1024,
        ),
        cost_estimate=cost,
    )(x2d, prep["w1"], prep["b1"], prep["w2"], prep["b2"], prep["w3"], prep["b3"])

    return out[:B, :n_classes]


def init_params(key, input_size, hidden_layer_size):
    """Deterministic PyTorch-style init: U(-1/sqrt(fan_in), 1/sqrt(fan_in))."""
    dims = [
        (hidden_layer_size, input_size),
        (hidden_layer_size // 2, hidden_layer_size),
        (10, hidden_layer_size // 2),
    ]
    params = {}
    for i, (fan_out, fan_in) in enumerate(dims, start=1):
        key, kw, kb = jax.random.split(key, 3)
        bound = 1.0 / (fan_in ** 0.5)
        params[f"w{i}"] = jax.random.uniform(
            kw, (fan_out, fan_in), jnp.float32, minval=-bound, maxval=bound)
        params[f"b{i}"] = jax.random.uniform(
            kb, (fan_out,), jnp.float32, minval=-bound, maxval=bound)
    return params


if __name__ == "__main__":
    key = jax.random.PRNGKey(0)
    input_size = 64          # e.g. flattened 8x8 image
    hidden_layer_size = 32
    batch = 8

    kp, kx = jax.random.split(key)
    params = init_params(kp, input_size, hidden_layer_size)
    # Input shaped like a mini image batch; forward flattens it itself.
    x = jax.random.normal(kx, (batch, 1, 8, 8), jnp.float32)

    prep = prepare_params(params, n_classes=10)   # one-time param prep (hoisted)
    out = linear_module_forward(x, prep, n_classes=10)
    out = jax.block_until_ready(out)

    # Sanity check against pure-JAX reference.
    x2d = x.reshape(-1, input_size)
    h1 = jnp.maximum(x2d @ params["w1"].T + params["b1"], 0.0)
    h2 = jnp.maximum(h1 @ params["w2"].T + params["b2"], 0.0)
    logits = h2 @ params["w3"].T + params["b3"]
    ref = jax.nn.log_softmax(logits, axis=1)
    assert out.shape == (batch, 10)
    assert jnp.allclose(out, ref, atol=1e-5, rtol=1e-5)

    print("KERNEL_OK")
</pallas_src>

<mosaic_0001>
module attributes {stable_mosaic.version = 11 : i64} {
  func.func @mlp_logsoftmax_kernel(%arg0: i32, %arg1: memref<8x64xf32, #tpu.memory_space<vmem>>, %arg2: memref<64x128xf32, #tpu.memory_space<vmem>>, %arg3: memref<1x128xf32, #tpu.memory_space<vmem>>, %arg4: memref<128x128xf32, #tpu.memory_space<vmem>>, %arg5: memref<1x128xf32, #tpu.memory_space<vmem>>, %arg6: memref<128x128xf32, #tpu.memory_space<vmem>>, %arg7: memref<1x128xf32, #tpu.memory_space<vmem>>, %arg8: memref<8x128xf32, #tpu.memory_space<vmem>>) attributes {dimension_semantics = [#tpu.dimension_semantics<parallel>], iteration_bounds = array<i64: 1>, scalar_prefetch = 0 : i64, scratch_operands = 0 : i64, tpu.core_type = #tpu.core_type<tc>, window_params = [{transform_indices = @transform_0, window_bounds = array<i64: 8, 64>}, {pipeline_mode = #tpu.pipeline_mode<synchronous>, transform_indices = @transform_1, window_bounds = array<i64: 64, 128>}, {pipeline_mode = #tpu.pipeline_mode<synchronous>, transform_indices = @transform_2, window_bounds = array<i64: 1, 128>}, {pipeline_mode = #tpu.pipeline_mode<synchronous>, transform_indices = @transform_3, window_bounds = array<i64: 128, 128>}, {pipeline_mode = #tpu.pipeline_mode<synchronous>, transform_indices = @transform_4, window_bounds = array<i64: 1, 128>}, {pipeline_mode = #tpu.pipeline_mode<synchronous>, transform_indices = @transform_5, window_bounds = array<i64: 128, 128>}, {pipeline_mode = #tpu.pipeline_mode<synchronous>, transform_indices = @transform_6, window_bounds = array<i64: 1, 128>}, {transform_indices = @transform_7, window_bounds = array<i64: 8, 128>}]} {
    %c0 = arith.constant 0 : index
    %c0_0 = arith.constant 0 : index
    %0 = vector.load %arg1[%c0, %c0_0] : memref<8x64xf32, #tpu.memory_space<vmem>>, vector<8x64xf32>
    %c0_1 = arith.constant 0 : index
    %c0_2 = arith.constant 0 : index
    %1 = vector.load %arg2[%c0_1, %c0_2] : memref<64x128xf32, #tpu.memory_space<vmem>>, vector<64x128xf32>
    %cst = arith.constant dense<0.000000e+00> : vector<8x128xf32>
    %2 = tpu.matmul %0, %1, %cst {dimension_numbers = #tpu.dot_dimension_numbers<[1], [0], [0], [1], [0, 0, 1, 1], [], []>} : vector<8x64xf32>, vector<64x128xf32>, vector<8x128xf32> -> vector<8x128xf32>
    %c0_3 = arith.constant 0 : index
    %c0_4 = arith.constant 0 : index
    %3 = vector.load %arg3[%c0_3, %c0_4] : memref<1x128xf32, #tpu.memory_space<vmem>>, vector<1x128xf32>
    %4 = vector.broadcast %3 : vector<1x128xf32> to vector<8x128xf32>
    %5 = arith.addf %2, %4 : vector<8x128xf32>
    %cst_5 = arith.constant 0.000000e+00 : f32
    %6 = vector.broadcast %cst_5 : f32 to vector<8x128xf32>
    %7 = arith.maximumf %5, %6 : vector<8x128xf32>
    %c0_6 = arith.constant 0 : index
    %c0_7 = arith.constant 0 : index
    %8 = vector.load %arg4[%c0_6, %c0_7] : memref<128x128xf32, #tpu.memory_space<vmem>>, vector<128x128xf32>
    %cst_8 = arith.constant dense<0.000000e+00> : vector<8x128xf32>
    %9 = tpu.matmul %7, %8, %cst_8 {dimension_numbers = #tpu.dot_dimension_numbers<[1], [0], [0], [1], [0, 0, 1, 1], [], []>} : vector<8x128xf32>, vector<128x128xf32>, vector<8x128xf32> -> vector<8x128xf32>
    %c0_9 = arith.constant 0 : index
    %c0_10 = arith.constant 0 : index
    %10 = vector.load %arg5[%c0_9, %c0_10] : memref<1x128xf32, #tpu.memory_space<vmem>>, vector<1x128xf32>
    %11 = vector.broadcast %10 : vector<1x128xf32> to vector<8x128xf32>
    %12 = arith.addf %9, %11 : vector<8x128xf32>
    %cst_11 = arith.constant 0.000000e+00 : f32
    %13 = vector.broadcast %cst_11 : f32 to vector<8x128xf32>
    %14 = arith.maximumf %12, %13 : vector<8x128xf32>
    %c0_12 = arith.constant 0 : index
    %c0_13 = arith.constant 0 : index
    %15 = vector.load %arg6[%c0_12, %c0_13] : memref<128x128xf32, #tpu.memory_space<vmem>>, vector<128x128xf32>
    %cst_14 = arith.constant dense<0.000000e+00> : vector<8x128xf32>
    %16 = tpu.matmul %14, %15, %cst_14 {dimension_numbers = #tpu.dot_dimension_numbers<[1], [0], [0], [1], [0, 0, 1, 1], [], []>} : vector<8x128xf32>, vector<128x128xf32>, vector<8x128xf32> -> vector<8x128xf32>
    %c0_15 = arith.constant 0 : index
    %c0_16 = arith.constant 0 : index
    %17 = vector.load %arg7[%c0_15, %c0_16] : memref<1x128xf32, #tpu.memory_space<vmem>>, vector<1x128xf32>
    %18 = vector.broadcast %17 : vector<1x128xf32> to vector<8x128xf32>
    %19 = arith.addf %16, %18 : vector<8x128xf32>
    %cst_17 = arith.constant dense<0xFF800000> : vector<8xf32>
    %20 = vector.multi_reduction <maximumf>, %19, %cst_17 [1] : vector<8x128xf32> to vector<8xf32>
    %21 = vector.shape_cast %20 : vector<8xf32> to vector<8x1xf32>
    %22 = vector.broadcast %21 : vector<8x1xf32> to vector<8x128xf32>
    %23 = arith.subf %19, %22 : vector<8x128xf32>
    %24 = math.exp %23 : vector<8x128xf32>
    %cst_18 = arith.constant dense<0.000000e+00> : vector<8xf32>
    %25 = vector.multi_reduction <add>, %24, %cst_18 [1] : vector<8x128xf32> to vector<8xf32>
    %26 = vector.shape_cast %25 : vector<8xf32> to vector<8x1xf32>
    %27 = math.log %26 : vector<8x1xf32>
    %28 = vector.broadcast %27 : vector<8x1xf32> to vector<8x128xf32>
    %29 = arith.subf %23, %28 : vector<8x128xf32>
    %c0_19 = arith.constant 0 : index
    %c0_20 = arith.constant 0 : index
    %30 = vector.load %arg8[%c0_19, %c0_20] : memref<8x128xf32, #tpu.memory_space<vmem>>, vector<8x128xf32>
    tpu.vector_store %arg8[%c0_19, %c0_20], %29 {strides = array<i32>} : memref<8x128xf32, #tpu.memory_space<vmem>>, vector<8x128xf32>,
    return
  }
  func.func @transform_0(%arg0: i32) -> (i32, i32) {
    %c0_i32 = arith.constant 0 : i32
    %c0_i32_0 = arith.constant 0 : i32
    return %arg0, %c0_i32 : i32, i32
  }
  func.func @transform_1(%arg0: i32) -> (i32, i32) {
    %c0_i32 = arith.constant 0 : i32
    %c0_i32_0 = arith.constant 0 : i32
    %c0_i32_1 = arith.constant 0 : i32
    return %c0_i32, %c0_i32_0 : i32, i32
  }
  func.func @transform_2(%arg0: i32) -> (i32, i32) {
    %c0_i32 = arith.constant 0 : i32
    %c0_i32_0 = arith.constant 0 : i32
    %c0_i32_1 = arith.constant 0 : i32
    return %c0_i32, %c0_i32_0 : i32, i32
  }
  func.func @transform_3(%arg0: i32) -> (i32, i32) {
    %c0_i32 = arith.constant 0 : i32
    %c0_i32_0 = arith.constant 0 : i32
    %c0_i32_1 = arith.constant 0 : i32
    return %c0_i32, %c0_i32_0 : i32, i32
  }
  func.func @transform_4(%arg0: i32) -> (i32, i32) {
    %c0_i32 = arith.constant 0 : i32
    %c0_i32_0 = arith.constant 0 : i32
    %c0_i32_1 = arith.constant 0 : i32
    return %c0_i32, %c0_i32_0 : i32, i32
  }
  func.func @transform_5(%arg0: i32) -> (i32, i32) {
    %c0_i32 = arith.constant 0 : i32
    %c0_i32_0 = arith.constant 0 : i32
    %c0_i32_1 = arith.constant 0 : i32
    return %c0_i32, %c0_i32_0 : i32, i32
  }
  func.func @transform_6(%arg0: i32) -> (i32, i32) {
    %c0_i32 = arith.constant 0 : i32
    %c0_i32_0 = arith.constant 0 : i32
    %c0_i32_1 = arith.constant 0 : i32
    return %c0_i32, %c0_i32_0 : i32, i32
  }
  func.func @transform_7(%arg0: i32) -> (i32, i32) {
    %c0_i32 = arith.constant 0 : i32
    %c0_i32_0 = arith.constant 0 : i32
    return %arg0, %c0_i32 : i32, i32
  }
}

</mosaic_0001>

<llo_original>
// kernel: linear_module_forward.1
$region0: #{linear_module_forward.1}
  #allocation0 [shape = 'u32[]', space=smem, size = 0x4, offset = 0x4, fixed_abs, tag = 'smem constant byte address 0x4 - core index']
  #allocation1 [shape = 'u32[72,128]{1,0:T(1,128)}', space=vmem, size = 0x9000, scoped, tag = 'internal scratch']
  %s0 = inlined_call_operand.vmem [shape: f32[8,64], index: 0, kind: input, shape index: {}]
  %s1 = inlined_call_operand.vmem [shape: f32[64,128], index: 1, kind: input, shape index: {}]
  %s2 = inlined_call_operand.vmem [shape: f32[1,128], index: 2, kind: input, shape index: {}]
  %s3 = inlined_call_operand.hbm [shape: f32[128,128], index: 3, kind: input, shape index: {}]
  %s4 = inlined_call_operand.vmem [shape: f32[1,128], index: 4, kind: input, shape index: {}]
  %s5 = inlined_call_operand.hbm [shape: f32[128,128], index: 5, kind: input, shape index: {}]
  %s6 = inlined_call_operand.vmem [shape: f32[1,128], index: 6, kind: input, shape index: {}]
  %s7 = inlined_call_operand.hbm [shape: f32[8,128], index: 7, kind: output, shape index: {}]
  %s8 = sld [smem:[#allocation0]]
  $region46: #{linear_module_forward.1} parent=0
    _
  %s10 = ssub.s32 1, %s8
  %s11 = scalar_select 0, %s10, %s8
  $region1: #{linear_module_forward.1} parent=0
    #allocation2 [shape = 'u8[65536]{0}', space=vmem, size = 0x10000, scoped, tag = 'input window, operand 3, single buffered']
    #allocation3 [shape = 's32[1]{0}', space=sflag, size = 0x4, scoped, tag = 'scoped memory for linear_module_forward.1']
    #allocation4 [shape = 's32[1]{0}', space=sflag, size = 0x4, scoped, tag = 'scoped memory for linear_module_forward.1']
    #allocation5 [shape = 'u8[65536]{0}', space=vmem, size = 0x10000, scoped, tag = 'input window, operand 5, single buffered']
    #allocation6 [shape = 's32[1]{0}', space=sflag, size = 0x4, scoped, tag = 'scoped memory for linear_module_forward.1']
    #allocation7 [shape = 'u8[4096]{0}', space=vmem, size = 0x1000, scoped, tag = 'output window, operand 0, single buffered']
    %12 = vsyncpa [#allocation3], 0
    %13 = vsyncpa [#allocation6], 0
    %14 = vsyncpa [#allocation4], 0
    // Predicated region
    $region2: #{linear_module_forward.1} parent=1 // pred_check
      _
    $region3: #{linear_module_forward.1} parent=1 // pred_check_branch
      %16 = sbr.rel (0) target = $region5
    $region4: #{linear_module_forward.1} parent=1 // pred_region
      _
    $region5: #{linear_module_forward.1} parent=1 // pred_fallthru
      _
    // Predicated region
    $region6: #{linear_module_forward.1} parent=1 // pred_check
      _
    $region7: #{linear_module_forward.1} parent=1 // pred_check_branch
      %18 = sbr.rel (0) target = $region9
    $region8: #{linear_module_forward.1} parent=1 // pred_region
      _
    $region9: #{linear_module_forward.1} parent=1 // pred_fallthru
      _
    // Predicated region
    $region10: #{linear_module_forward.1} parent=1 // pred_check
      _
    $region11: #{linear_module_forward.1} parent=1 // pred_check_branch
      %20 = sbr.rel (0) target = $region13
    $region12: #{linear_module_forward.1} parent=1 // pred_region
      _
    $region13: #{linear_module_forward.1} parent=1 // pred_fallthru
      _
    // Predicated region
    $region14: #{linear_module_forward.1} parent=1 // pred_check
      _
    $region15: #{linear_module_forward.1} parent=1 // pred_check_branch
      %22 = sbr.rel (0) target = $region17
    $region16: #{linear_module_forward.1} parent=1 // pred_region
      %24 = vsyncadd [#allocation3], 0
      %s25 = sshll.u32 %s3, 4
      %s26 = int_to_ptr.hbm [resolvable:$true] %s25
      %s27 = sshll.u32 [#allocation2], 4
      %s28 = int_to_ptr.vmem [resolvable:$true] %s27
      %33 = dma.hbm_to_vmem [thread:$0]  %s26, 2048, %s28, [#allocation3], 128, 128, 8
    $region17: #{linear_module_forward.1} parent=1 // pred_fallthru
      _
    // Predicated region
    $region18: #{linear_module_forward.1} parent=1 // pred_check
      _
    $region19: #{linear_module_forward.1} parent=1 // pred_check_branch
      %35 = sbr.rel (0) target = $region21
    $region20: #{linear_module_forward.1} parent=1 // pred_region
      _
    $region21: #{linear_module_forward.1} parent=1 // pred_fallthru
      _
    // Predicated region
    $region22: #{linear_module_forward.1} parent=1 // pred_check
      _
    $region23: #{linear_module_forward.1} parent=1 // pred_check_branch
      %37 = sbr.rel (0) target = $region25
    $region24: #{linear_module_forward.1} parent=1 // pred_region
      %39 = vsyncadd [#allocation6], 0
      %s40 = sshll.u32 %s5, 4
      %s41 = int_to_ptr.hbm [resolvable:$true] %s40
      %s42 = sshll.u32 [#allocation5], 4
      %s43 = int_to_ptr.vmem [resolvable:$true] %s42
      %48 = dma.hbm_to_vmem [thread:$0]  %s41, 2048, %s43, [#allocation6], 128, 128, 8
    $region25: #{linear_module_forward.1} parent=1 // pred_fallthru
      _
    // Predicated region
    $region26: #{linear_module_forward.1} parent=1 // pred_check
      _
    $region27: #{linear_module_forward.1} parent=1 // pred_check_branch
      %50 = sbr.rel (0) target = $region29
    $region28: #{linear_module_forward.1} parent=1 // pred_region
      _
    $region29: #{linear_module_forward.1} parent=1 // pred_fallthru
      _
    // Predicated region
    $region30: #{linear_module_forward.1} parent=1 // pred_check
      _
    $region31: #{linear_module_forward.1} parent=1 // pred_check_branch
      %52 = sbr.rel (0) target = $region33
    $region32: #{linear_module_forward.1} parent=1 // pred_region
      %54 = dma.done [#allocation3], 2048
    $region33: #{linear_module_forward.1} parent=1 // pred_fallthru
      _
    // Predicated region
    $region34: #{linear_module_forward.1} parent=1 // pred_check
      _
    $region35: #{linear_module_forward.1} parent=1 // pred_check_branch
      %56 = sbr.rel (0) target = $region37
    $region36: #{linear_module_forward.1} parent=1 // pred_region
      %58 = dma.done [#allocation6], 2048
    $region37: #{linear_module_forward.1} parent=1 // pred_fallthru
      _
    %v59 = vld [vmem:[%s0] sm:$0xff]
    %v60 = vld [vmem:[%s1] sm:$0xff]
    %v61 = vld [vmem:[%s1 + $0x8] sm:$0xff]
    %v62 = vld [vmem:[%s1 + $0x10] sm:$0xff]
    %v63 = vld [vmem:[%s1 + $0x18] sm:$0xff]
    %v64 = vld [vmem:[%s1 + $0x20] sm:$0xff]
    %v65 = vld [vmem:[%s1 + $0x28] sm:$0xff]
    %v66 = vld [vmem:[%s1 + $0x30] sm:$0xff]
    %v67 = vld [vmem:[%s1 + $0x38] sm:$0xff]
    %v68 = vld [vmem:[%s2] sm:$0x1]
    %v70 = vperm.slane %v68, 0
    %vm72 = vcmask 523264
    %v74 = vsel %vm72, %v59, 0
    %76 = vmatpush.msra.mxu0 0.0
    %77 = vmatpush.msra.mxu0 0.0
    %78 = vmatpush.msra.mxu0 0.0
    %79 = vmatpush.msra.mxu0 0.0
    %80 = vmatpush.msra.mxu0 0.0
    %81 = vmatpush.msra.mxu0 0.0
    %82 = vmatpush.msra.mxu0 0.0
    %83 = vmatpush.msra.mxu0 0.0
    %84 = vmatpush.msra.mxu0 %v67
    %85 = vmatpush.msra.mxu0 %v66
    %86 = vmatpush.msra.mxu0 %v65
    %87 = vmatpush.msra.mxu0 %v64
    %88 = vmatpush.msra.mxu0 %v63
    %89 = vmatpush.msra.mxu0 %v62
    %90 = vmatpush.msra.mxu0 %v61
    %91 = vmatpush.msra.mxu0 %v60
    %92 = vmatmul.f32.gmra.mxu0 %v74
    %v93 = vpop.f32.mrf.mxu0
    %v94 = vadd.f32 %v70, %v93
    %95 = vdwg.mxu0
    %v96 = vmax.f32 %v94, 0.0
    %v97 = vld [vmem:[#allocation2] sm:$0xff]
    %v98 = vld [vmem:[#allocation2 + $0x8] sm:$0xff]
    %v99 = vld [vmem:[#allocation2 + $0x10] sm:$0xff]
    %v100 = vld [vmem:[#allocation2 + $0x18] sm:$0xff]
    %v101 = vld [vmem:[#allocation2 + $0x20] sm:$0xff]
    %v102 = vld [vmem:[#allocation2 + $0x28] sm:$0xff]
    %v103 = vld [vmem:[#allocation2 + $0x30] sm:$0xff]
    %v104 = vld [vmem:[#allocation2 + $0x38] sm:$0xff]
    %v105 = vld [vmem:[#allocation2 + $0x40] sm:$0xff]
    %v106 = vld [vmem:[#allocation2 + $0x48] sm:$0xff]
    %v107 = vld [vmem:[#allocation2 + $0x50] sm:$0xff]
    %v108 = vld [vmem:[#allocation2 + $0x58] sm:$0xff]
    %v109 = vld [vmem:[#allocation2 + $0x60] sm:$0xff]
    %v110 = vld [vmem:[#allocation2 + $0x68] sm:$0xff]
    %v111 = vld [vmem:[#allocation2 + $0x70] sm:$0xff]
    %v112 = vld [vmem:[#allocation2 + $0x78] sm:$0xff]
    %v113 = vld [vmem:[%s4] sm:$0x1]
    %v115 = vperm.slane %v113, 0
    %117 = vmatpush.msra.mxu0 %v112
    %118 = vmatpush.msra.mxu0 %v111
    %119 = vmatpush.msra.mxu0 %v110
    %120 = vmatpush.msra.mxu0 %v109
    %121 = vmatpush.msra.mxu0 %v108
    %122 = vmatpush.msra.mxu0 %v107
    %123 = vmatpush.msra.mxu0 %v106
    %124 = vmatpush.msra.mxu0 %v105
    %125 = vmatpush.msra.mxu0 %v104
    %126 = vmatpush.msra.mxu0 %v103
    %127 = vmatpush.msra.mxu0 %v102
    %128 = vmatpush.msra.mxu0 %v101
    %129 = vmatpush.msra.mxu0 %v100
    %130 = vmatpush.msra.mxu0 %v99
    %131 = vmatpush.msra.mxu0 %v98
    %132 = vmatpush.msra.mxu0 %v97
    %133 = vmatmul.f32.gmra.mxu0 %v96
    %v134 = vpop.f32.mrf.mxu0
    %v135 = vadd.f32 %v115, %v134
    %136 = vdwg.mxu0
    %v137 = vmax.f32 %v135, 0.0
    %v138 = vld [vmem:[#allocation5] sm:$0xff]
    %v139 = vld [vmem:[#allocation5 + $0x8] sm:$0xff]
    %v140 = vld [vmem:[#allocation5 + $0x10] sm:$0xff]
    %v141 = vld [vmem:[#allocation5 + $0x18] sm:$0xff]
    %v142 = vld [vmem:[#allocation5 + $0x20] sm:$0xff]
    %v143 = vld [vmem:[#allocation5 + $0x28] sm:$0xff]
    %v144 = vld [vmem:[#allocation5 + $0x30] sm:$0xff]
    %v145 = vld [vmem:[#allocation5 + $0x38] sm:$0xff]
    %v146 = vld [vmem:[#allocation5 + $0x40] sm:$0xff]
    %v147 = vld [vmem:[#allocation5 + $0x48] sm:$0xff]
    %v148 = vld [vmem:[#allocation5 + $0x50] sm:$0xff]
    %v149 = vld [vmem:[#allocation5 + $0x58] sm:$0xff]
    %v150 = vld [vmem:[#allocation5 + $0x60] sm:$0xff]
    %v151 = vld [vmem:[#allocation5 + $0x68] sm:$0xff]
    %v152 = vld [vmem:[#allocation5 + $0x70] sm:$0xff]
    %v153 = vld [vmem:[#allocation5 + $0x78] sm:$0xff]
    %v154 = vld [vmem:[%s6] sm:$0x1]
    %v156 = vperm.slane %v154, 0
    %158 = vmatpush.msra.mxu0 %v153
    %159 = vmatpush.msra.mxu0 %v152
    %160 = vmatpush.msra.mxu0 %v151
    %161 = vmatpush.msra.mxu0 %v150
    %162 = vmatpush.msra.mxu0 %v149
    %163 = vmatpush.msra.mxu0 %v148
    %164 = vmatpush.msra.mxu0 %v147
    %165 = vmatpush.msra.mxu0 %v146
    %166 = vmatpush.msra.mxu0 %v145
    %167 = vmatpush.msra.mxu0 %v144
    %168 = vmatpush.msra.mxu0 %v143
    %169 = vmatpush.msra.mxu0 %v142
    %170 = vmatpush.msra.mxu0 %v141
    %171 = vmatpush.msra.mxu0 %v140
    %172 = vmatpush.msra.mxu0 %v139
    %173 = vmatpush.msra.mxu0 %v138
    %174 = vmatmul.f32.gmra.mxu0 %v137
    %v175 = vpop.f32.mrf.mxu0
    %v176 = vadd.f32 %v156, %v175
    %177 = vdwg.mxu0
    %178 = vmax.xlane.f32.xlu0 %v176
    %v179 = vpop.xlane.xlu0 %178
    %v180 = vsub.f32 %v176, %v179
    %v181 = vmul.f32 %v180, 1.442695
    %v182 = vpow.pop %v181
    %183 = vadd.xlane.f32.xlu0 %v182
    %v184 = vpop.xlane.xlu0 %183
    %v185 = vlog2.pop %v184
    %v186 = vmul.f32 %v185, 0.6931472
    %v187 = vsub.f32 %v180, %v186
    %188 = vst [vmem:[#allocation7] sm:$0xff] %v187
    // Predicated region
    $region38: #{linear_module_forward.1} parent=1 // pred_check
      _
    $region39: #{linear_module_forward.1} parent=1 // pred_check_branch
      %190 = sbr.rel (0) target = $region41
    $region40: #{linear_module_forward.1} parent=1 // pred_region
      %192 = vsyncadd [#allocation4], 0
      %s194 = sshll.u32 [#allocation7], 4
      %s195 = int_to_ptr.vmem [resolvable:$true] %s194
      %s196 = sshll.u32 %s7, 4
      %s197 = int_to_ptr.hbm [resolvable:$true] %s196
      %199 = dma.vmem_to_hbm [thread:$0]  %s195, 128, %s197, [#allocation4]
    $region41: #{linear_module_forward.1} parent=1 // pred_fallthru
      _
    // Predicated region
    $region42: #{linear_module_forward.1} parent=1 // pred_check
      _
    $region43: #{linear_module_forward.1} parent=1 // pred_check_branch
      %201 = sbr.rel (0) target = $region45
    $region44: #{linear_module_forward.1} parent=1 // pred_region
      %203 = dma.done [#allocation4], 128
    $region45: #{linear_module_forward.1} parent=1 // pred_fallthru
      _
    %204 = vsyncpa [#allocation3], 1
    %205 = vsyncpa [#allocation6], 1
    %206 = vsyncpa [#allocation4], 1

</llo_original>
